<compile_context>
chip_gen: v5e
topology: v5e:2x2
jax: 0.10.0
libtpu: 0.0.40
codegen_flags: <defaults>
</compile_context>

<pallas_src>
import functools

import jax
import jax.numpy as jnp
from jax.experimental import pallas as pl
from jax.experimental.pallas import tpu as pltpu

LANE = 128   # TPU lane width
D_IN = 64    # fixed input feature dim in the torch module
H_PAD = LANE  # hidden dim padded to a full lane group
C_PAD = LANE  # class dim padded to a full lane group (lane-dense output)


def _round_up(x, m):
    return ((x + m - 1) // m) * m


def classifier_kernel(x_ref, w1_ref, b1_ref, w2_ref, b2_ref, o_ref, *, num_classes):
    # x arrives f32; cast to bf16 on-chip (saves the wrapper-side HBM round trip).
    x_bf = x_ref[...].astype(jnp.bfloat16)

    # fc1: bf16 operands on the MXU, f32 accumulation; bias + relu in f32 (VPU).
    h = jnp.dot(x_bf, w1_ref[...], preferred_element_type=jnp.float32)
    h = jnp.maximum(h + b1_ref[...], 0.0)
    # Padded hidden columns are exactly zero (zero weight cols + zero bias),
    # and the matching rows of w2 are zero, so padding adds nothing to fc2.

    # Dropout: module evaluated in inference mode (training=False) -> identity.
    # TODO(synk): training-mode dropout would need pltpu.prng_seed + prng_random_bits.

    # fc2: bf16 operands, f32 accumulation.
    logits = jnp.dot(h.astype(jnp.bfloat16), w2_ref[...],
                     preferred_element_type=jnp.float32)
    logits = logits + b2_ref[...]

    # Mask the padded class columns out of the log-softmax reductions (f32 math).
    col = jax.lax.broadcasted_iota(jnp.int32, logits.shape, 1)
    masked = jnp.where(col < num_classes, logits, jnp.float32(-1e30))

    m = jnp.max(masked, axis=-1, keepdims=True)
    shifted = masked - m
    lse = jnp.log(jnp.sum(jnp.exp(shifted), axis=-1, keepdims=True))
    # Final cast is the very last op before the lane-dense (128-wide), unmasked
    # store; bf16 output halves writeback bytes (and vst pressure on v5e).
    o_ref[...] = (shifted - lse).astype(o_ref.dtype)


def prepare_classifier_params(w1, b1, w2, b2):
    """One-time setup: lane-dense zero-padding + bf16 casts for the matmul operands.

    w1: [64, dim_c], b1: [dim_c], w2: [dim_c, C], b2: [C]
    (weights already transposed to [in_features, out_features]).
    """
    dim_c = w1.shape[1]
    num_classes = w2.shape[1]
    w1p = jnp.zeros((D_IN, H_PAD), jnp.float32).at[:, :dim_c].set(w1).astype(jnp.bfloat16)
    b1p = jnp.zeros((1, H_PAD), jnp.float32).at[0, :dim_c].set(b1)
    w2p = (jnp.zeros((H_PAD, C_PAD), jnp.float32)
           .at[:dim_c, :num_classes].set(w2).astype(jnp.bfloat16))
    b2p = jnp.zeros((1, C_PAD), jnp.float32).at[0, :num_classes].set(b2)
    return {"w1": w1p, "b1": b1p, "w2": w2p, "b2": b2p, "num_classes": num_classes}


def classifier_forward(x, params, *, block_b=1024):
    """x: [B, 64] f32; params from prepare_classifier_params. Returns [B, C] f32."""
    B = x.shape[0]
    num_classes = params["num_classes"]

    # Batch tile selection:
    #  * B <= 128: one tile, sublane-aligned (16-row alignment for bf16 packing,
    #    exact 8-row tile when B == 8 to avoid any padding).
    #  * B  > 128: 128-multiple tiles, at least 2 grid steps (v7x megacore can
    #    shard the "parallel" batch axis across both TCs), capped at block_b.
    # No jnp.pad of x: grid uses cdiv and Pallas pads the ragged last block;
    # garbage rows stay in their own rows (row-wise reductions) and their
    # out-of-bounds output writes are dropped.
    if B <= 8:
        tb = 8
    elif B <= 128:
        tb = _round_up(B, 16)
    else:
        tb = min(block_b, max(128, _round_up(pl.cdiv(B, 2), 128)))
    grid = (pl.cdiv(B, tb),)

    cost = pl.CostEstimate(
        flops=2 * B * (D_IN * H_PAD + H_PAD * C_PAD),
        transcendentals=B * C_PAD,
        bytes_accessed=(x.size * 4
                        + params["w1"].size * 2 + params["w2"].size * 2
                        + params["b1"].size * 4 + params["b2"].size * 4
                        + B * C_PAD * 2),
    )

    out = pl.pallas_call(
        functools.partial(classifier_kernel, num_classes=num_classes),
        out_shape=jax.ShapeDtypeStruct((B, C_PAD), jnp.bfloat16),
        grid=grid,
        in_specs=[
            pl.BlockSpec((tb, D_IN), lambda i: (i, 0)),      # batch-tiled activations (f32)
            pl.BlockSpec((D_IN, H_PAD), lambda i: (0, 0)),   # weight-stationary
            pl.BlockSpec((1, H_PAD), lambda i: (0, 0)),
            pl.BlockSpec((H_PAD, C_PAD), lambda i: (0, 0)),
            pl.BlockSpec((1, C_PAD), lambda i: (0, 0)),
        ],
        out_specs=pl.BlockSpec((tb, C_PAD), lambda i: (i, 0)),
        compiler_params=pltpu.CompilerParams(
            dimension_semantics=("parallel",),
            vmem_limit_bytes=32 * 1024 * 1024,
        ),
        cost_estimate=cost,
    )(x, params["w1"], params["b1"], params["w2"], params["b2"])

    # Slice off the lane-padded class columns; f32 matches torch's output dtype.
    return out[:, :num_classes].astype(jnp.float32)


def reference_forward(x, w1, b1, w2, b2):
    h = jnp.maximum(x @ w1 + b1, 0.0)
    logits = h @ w2 + b2
    return jax.nn.log_softmax(logits, axis=-1)


if __name__ == "__main__":
    # Module hyperparameters: nn.Linear(64, dim_c), nn.Linear(dim_c, num_classes)
    dim = 64
    dim_c = 32
    num_classes = 10
    batch = 8

    key = jax.random.PRNGKey(0)
    kx, kw1, kb1, kw2, kb2 = jax.random.split(key, 5)

    x = jax.random.normal(kx, (batch, dim), dtype=jnp.float32)

    # Deterministic parameter init (Kaiming-uniform-ish bounds, like torch defaults)
    bound1 = 1.0 / (dim ** 0.5)
    w1 = jax.random.uniform(kw1, (dim, dim_c), jnp.float32, -bound1, bound1)
    b1 = jax.random.uniform(kb1, (dim_c,), jnp.float32, -bound1, bound1)

    bound2 = 1.0 / (dim_c ** 0.5)
    w2 = jax.random.uniform(kw2, (dim_c, num_classes), jnp.float32, -bound2, bound2)
    b2 = jax.random.uniform(kb2, (num_classes,), jnp.float32, -bound2, bound2)

    # One-time parameter prep (padding + bf16 casts hoisted out of the forward).
    params = prepare_classifier_params(w1, b1, w2, b2)

    out = classifier_forward(x, params)
    out = jax.block_until_ready(out)

    ref = reference_forward(x, w1, b1, w2, b2)
    assert out.shape == (batch, num_classes), out.shape
    # bf16 matmul operands + bf16 output store -> loosened tolerance vs f32 ref.
    assert jnp.allclose(out, ref, atol=3e-2, rtol=3e-2), "mismatch vs reference"
    # Sanity: rows are valid log-probabilities (sum of exp == 1), bf16-level tol.
    assert jnp.allclose(jnp.sum(jnp.exp(out), axis=-1), 1.0, atol=1e-2)

    print("KERNEL_OK")
</pallas_src>

<mosaic_0001>
module attributes {stable_mosaic.version = 11 : i64} {
  func.func @classifier_kernel(%arg0: i32, %arg1: memref<8x64xf32, #tpu.memory_space<vmem>>, %arg2: memref<64x128xbf16, #tpu.memory_space<vmem>>, %arg3: memref<1x128xf32, #tpu.memory_space<vmem>>, %arg4: memref<128x128xbf16, #tpu.memory_space<vmem>>, %arg5: memref<1x128xf32, #tpu.memory_space<vmem>>, %arg6: memref<8x128xbf16, #tpu.memory_space<vmem>>) attributes {dimension_semantics = [#tpu.dimension_semantics<parallel>], iteration_bounds = array<i64: 1>, scalar_prefetch = 0 : i64, scratch_operands = 0 : i64, tpu.core_type = #tpu.core_type<tc>, window_params = [{transform_indices = @transform_0, window_bounds = array<i64: 8, 64>}, {pipeline_mode = #tpu.pipeline_mode<synchronous>, transform_indices = @transform_1, window_bounds = array<i64: 64, 128>}, {pipeline_mode = #tpu.pipeline_mode<synchronous>, transform_indices = @transform_2, window_bounds = array<i64: 1, 128>}, {pipeline_mode = #tpu.pipeline_mode<synchronous>, transform_indices = @transform_3, window_bounds = array<i64: 128, 128>}, {pipeline_mode = #tpu.pipeline_mode<synchronous>, transform_indices = @transform_4, window_bounds = array<i64: 1, 128>}, {transform_indices = @transform_5, window_bounds = array<i64: 8, 128>}]} {
    %c0 = arith.constant 0 : index
    %c0_0 = arith.constant 0 : index
    %0 = vector.load %arg1[%c0, %c0_0] : memref<8x64xf32, #tpu.memory_space<vmem>>, vector<8x64xf32>
    %1 = arith.truncf %0 : vector<8x64xf32> to vector<8x64xbf16>
    %c0_1 = arith.constant 0 : index
    %c0_2 = arith.constant 0 : index
    %2 = vector.load %arg2[%c0_1, %c0_2] : memref<64x128xbf16, #tpu.memory_space<vmem>>, vector<64x128xbf16>
    %cst = arith.constant dense<0.000000e+00> : vector<8x128xf32>
    %3 = tpu.matmul %1, %2, %cst {dimension_numbers = #tpu.dot_dimension_numbers<[1], [0], [0], [1], [0, 0, 1, 1], [], []>} : vector<8x64xbf16>, vector<64x128xbf16>, vector<8x128xf32> -> vector<8x128xf32>
    %c0_3 = arith.constant 0 : index
    %c0_4 = arith.constant 0 : index
    %4 = vector.load %arg3[%c0_3, %c0_4] : memref<1x128xf32, #tpu.memory_space<vmem>>, vector<1x128xf32>
    %5 = vector.broadcast %4 : vector<1x128xf32> to vector<8x128xf32>
    %6 = arith.addf %3, %5 : vector<8x128xf32>
    %cst_5 = arith.constant 0.000000e+00 : f32
    %7 = vector.broadcast %cst_5 : f32 to vector<8x128xf32>
    %8 = arith.maximumf %6, %7 : vector<8x128xf32>
    %9 = arith.truncf %8 : vector<8x128xf32> to vector<8x128xbf16>
    %c0_6 = arith.constant 0 : index
    %c0_7 = arith.constant 0 : index
    %10 = vector.load %arg4[%c0_6, %c0_7] : memref<128x128xbf16, #tpu.memory_space<vmem>>, vector<128x128xbf16>
    %cst_8 = arith.constant dense<0.000000e+00> : vector<8x128xf32>
    %11 = tpu.matmul %9, %10, %cst_8 {dimension_numbers = #tpu.dot_dimension_numbers<[1], [0], [0], [1], [0, 0, 1, 1], [], []>} : vector<8x128xbf16>, vector<128x128xbf16>, vector<8x128xf32> -> vector<8x128xf32>
    %c0_9 = arith.constant 0 : index
    %c0_10 = arith.constant 0 : index
    %12 = vector.load %arg5[%c0_9, %c0_10] : memref<1x128xf32, #tpu.memory_space<vmem>>, vector<1x128xf32>
    %13 = vector.broadcast %12 : vector<1x128xf32> to vector<8x128xf32>
    %14 = arith.addf %11, %13 : vector<8x128xf32>
    %15 = tpu.iota {dimensions = array<i32: 1>} : vector<8x128xi32>
    %c10_i32 = arith.constant 10 : i32
    %16 = vector.broadcast %c10_i32 : i32 to vector<8x128xi32>
    %17 = arith.cmpi slt, %15, %16 : vector<8x128xi32>
    %cst_11 = arith.constant -1.000000e+30 : f32
    %18 = vector.broadcast %cst_11 : f32 to vector<8x128xf32>
    %19 = arith.select %17, %14, %18 : vector<8x128xi1>, vector<8x128xf32>
    %cst_12 = arith.constant dense<0xFF800000> : vector<8xf32>
    %20 = vector.multi_reduction <maximumf>, %19, %cst_12 [1] : vector<8x128xf32> to vector<8xf32>
    %21 = vector.shape_cast %20 : vector<8xf32> to vector<8x1xf32>
    %22 = vector.broadcast %21 : vector<8x1xf32> to vector<8x128xf32>
    %23 = arith.subf %19, %22 : vector<8x128xf32>
    %24 = math.exp %23 : vector<8x128xf32>
    %cst_13 = arith.constant dense<0.000000e+00> : vector<8xf32>
    %25 = vector.multi_reduction <add>, %24, %cst_13 [1] : vector<8x128xf32> to vector<8xf32>
    %26 = vector.shape_cast %25 : vector<8xf32> to vector<8x1xf32>
    %27 = math.log %26 : vector<8x1xf32>
    %28 = vector.broadcast %27 : vector<8x1xf32> to vector<8x128xf32>
    %29 = arith.subf %23, %28 : vector<8x128xf32>
    %30 = arith.truncf %29 : vector<8x128xf32> to vector<8x128xbf16>
    %c0_14 = arith.constant 0 : index
    %c0_15 = arith.constant 0 : index
    %31 = vector.load %arg6[%c0_14, %c0_15] : memref<8x128xbf16, #tpu.memory_space<vmem>>, vector<8x128xbf16>
    tpu.vector_store %arg6[%c0_14, %c0_15], %30 {strides = array<i32>} : memref<8x128xbf16, #tpu.memory_space<vmem>>, vector<8x128xbf16>,
    return
  }
  func.func @transform_0(%arg0: i32) -> (i32, i32) {
    %c0_i32 = arith.constant 0 : i32
    %c0_i32_0 = arith.constant 0 : i32
    return %arg0, %c0_i32 : i32, i32
  }
  func.func @transform_1(%arg0: i32) -> (i32, i32) {
    %c0_i32 = arith.constant 0 : i32
    %c0_i32_0 = arith.constant 0 : i32
    %c0_i32_1 = arith.constant 0 : i32
    return %c0_i32, %c0_i32_0 : i32, i32
  }
  func.func @transform_2(%arg0: i32) -> (i32, i32) {
    %c0_i32 = arith.constant 0 : i32
    %c0_i32_0 = arith.constant 0 : i32
    %c0_i32_1 = arith.constant 0 : i32
    return %c0_i32, %c0_i32_0 : i32, i32
  }
  func.func @transform_3(%arg0: i32) -> (i32, i32) {
    %c0_i32 = arith.constant 0 : i32
    %c0_i32_0 = arith.constant 0 : i32
    %c0_i32_1 = arith.constant 0 : i32
    return %c0_i32, %c0_i32_0 : i32, i32
  }
  func.func @transform_4(%arg0: i32) -> (i32, i32) {
    %c0_i32 = arith.constant 0 : i32
    %c0_i32_0 = arith.constant 0 : i32
    %c0_i32_1 = arith.constant 0 : i32
    return %c0_i32, %c0_i32_0 : i32, i32
  }
  func.func @transform_5(%arg0: i32) -> (i32, i32) {
    %c0_i32 = arith.constant 0 : i32
    %c0_i32_0 = arith.constant 0 : i32
    return %arg0, %c0_i32 : i32, i32
  }
}

</mosaic_0001>

<llo_original>
// kernel: tpu_custom_call.1
$region0: #{tpu_custom_call.1}
  #allocation0 [shape = 'u32[]', space=smem, size = 0x4, offset = 0x4, fixed_abs, tag = 'smem constant byte address 0x4 - core index']
  #allocation1 [shape = 'u32[72,128]{1,0:T(1,128)}', space=vmem, size = 0x9000, scoped, tag = 'internal scratch']
  %s0 = inlined_call_operand.hbm [shape: f32[8,64], index: 0, kind: input, shape index: {}]
  %s1 = inlined_call_operand.hbm [shape: bf16[64,128], index: 1, kind: input, shape index: {}]
  %s2 = inlined_call_operand.vmem [shape: f32[1,128], index: 2, kind: input, shape index: {}]
  %s3 = inlined_call_operand.hbm [shape: bf16[128,128], index: 3, kind: input, shape index: {}]
  %s4 = inlined_call_operand.vmem [shape: f32[1,128], index: 4, kind: input, shape index: {}]
  %s5 = inlined_call_operand.hbm [shape: bf16[8,128], index: 5, kind: output, shape index: {}]
  %s6 = sld [smem:[#allocation0]]
  $region42: #{tpu_custom_call.1} parent=0
    _
  %s8 = ssub.s32 1, %s6
  %s9 = scalar_select 0, %s8, %s6
  $region1: #{tpu_custom_call.1} parent=0
    #allocation2 [shape = 'u8[4096]{0}', space=vmem, size = 0x1000, scoped, tag = 'input window, operand 0, single buffered']
    #allocation3 [shape = 's32[1]{0}', space=sflag, size = 0x4, scoped, tag = 'scoped memory for tpu_custom_call.1']
    #allocation4 [shape = 's32[1]{0}', space=sflag, size = 0x4, scoped, tag = 'scoped memory for tpu_custom_call.1']
    #allocation5 [shape = 'u8[16384]{0}', space=vmem, size = 0x4000, scoped, tag = 'input window, operand 1, single buffered']
    #allocation6 [shape = 's32[1]{0}', space=sflag, size = 0x4, scoped, tag = 'scoped memory for tpu_custom_call.1']
    #allocation7 [shape = 'u8[32768]{0}', space=vmem, size = 0x8000, scoped, tag = 'input window, operand 3, single buffered']
    #allocation8 [shape = 'u8[2048]{0}', space=vmem, size = 0x800, scoped, tag = 'output window, operand 0, single buffered']
    %10 = vsyncpa [#allocation3], 0
    %11 = vsyncpa [#allocation6], 0
    %12 = vsyncpa [#allocation4], 0
    // Predicated region
    $region2: #{tpu_custom_call.1} parent=1 // pred_check
      _
    $region3: #{tpu_custom_call.1} parent=1 // pred_check_branch
      %14 = sbr.rel (0) target = $region5
    $region4: #{tpu_custom_call.1} parent=1 // pred_region
      %16 = vsyncadd [#allocation3], 0
      %s18 = sshll.u32 %s0, 4
      %s19 = int_to_ptr.hbm [resolvable:$true] %s18
      %s20 = sshll.u32 [#allocation2], 4
      %s21 = int_to_ptr.vmem [resolvable:$true] %s20
      %23 = dma.hbm_to_vmem [thread:$0]  %s19, 128, %s21, [#allocation3]
    $region5: #{tpu_custom_call.1} parent=1 // pred_fallthru
      _
    // Predicated region
    $region6: #{tpu_custom_call.1} parent=1 // pred_check
      _
    $region7: #{tpu_custom_call.1} parent=1 // pred_check_branch
      %25 = sbr.rel (0) target = $region9
    $region8: #{tpu_custom_call.1} parent=1 // pred_region
      %27 = vsyncadd [#allocation6], 0
      %s28 = sshll.u32 %s1, 4
      %s29 = int_to_ptr.hbm [resolvable:$true] %s28
      %s30 = sshll.u32 [#allocation5], 4
      %s31 = int_to_ptr.vmem [resolvable:$true] %s30
      %36 = dma.hbm_to_vmem [thread:$0]  %s29, 512, %s31, [#allocation6], 64, 64, 4
    $region9: #{tpu_custom_call.1} parent=1 // pred_fallthru
      _
    // Predicated region
    $region10: #{tpu_custom_call.1} parent=1 // pred_check
      _
    $region11: #{tpu_custom_call.1} parent=1 // pred_check_branch
      %38 = sbr.rel (0) target = $region13
    $region12: #{tpu_custom_call.1} parent=1 // pred_region
      _
    $region13: #{tpu_custom_call.1} parent=1 // pred_fallthru
      _
    // Predicated region
    $region14: #{tpu_custom_call.1} parent=1 // pred_check
      _
    $region15: #{tpu_custom_call.1} parent=1 // pred_check_branch
      %40 = sbr.rel (0) target = $region17
    $region16: #{tpu_custom_call.1} parent=1 // pred_region
      %42 = vsyncadd [#allocation6], 0
      %s43 = sshll.u32 %s3, 4
      %s44 = int_to_ptr.hbm [resolvable:$true] %s43
      %s45 = sshll.u32 [#allocation7], 4
      %s46 = int_to_ptr.vmem [resolvable:$true] %s45
      %51 = dma.hbm_to_vmem [thread:$0]  %s44, 1024, %s46, [#allocation6], 64, 64, 4
    $region17: #{tpu_custom_call.1} parent=1 // pred_fallthru
      _
    // Predicated region
    $region18: #{tpu_custom_call.1} parent=1 // pred_check
      _
    $region19: #{tpu_custom_call.1} parent=1 // pred_check_branch
      %53 = sbr.rel (0) target = $region21
    $region20: #{tpu_custom_call.1} parent=1 // pred_region
      _
    $region21: #{tpu_custom_call.1} parent=1 // pred_fallthru
      _
    // Predicated region
    $region22: #{tpu_custom_call.1} parent=1 // pred_check
      _
    $region23: #{tpu_custom_call.1} parent=1 // pred_check_branch
      %55 = sbr.rel (0) target = $region25
    $region24: #{tpu_custom_call.1} parent=1 // pred_region
      %57 = dma.done [#allocation3], 128
    $region25: #{tpu_custom_call.1} parent=1 // pred_fallthru
      _
    // Predicated region
    $region26: #{tpu_custom_call.1} parent=1 // pred_check
      _
    $region27: #{tpu_custom_call.1} parent=1 // pred_check_branch
      %59 = sbr.rel (0) target = $region29
    $region28: #{tpu_custom_call.1} parent=1 // pred_region
      %61 = dma.done [#allocation6], 512
    $region29: #{tpu_custom_call.1} parent=1 // pred_fallthru
      _
    // Predicated region
    $region30: #{tpu_custom_call.1} parent=1 // pred_check
      _
    $region31: #{tpu_custom_call.1} parent=1 // pred_check_branch
      %63 = sbr.rel (0) target = $region33
    $region32: #{tpu_custom_call.1} parent=1 // pred_region
      %65 = dma.done [#allocation6], 1024
    $region33: #{tpu_custom_call.1} parent=1 // pred_fallthru
      _
    %v67 = vld [vmem:[#allocation2] sm:$0xff]
    %v68 = vpack.c.bf16 %v67, %v67
    %v69 = vld [vmem:[#allocation5] sm:$0xf]
    %v70 = vld [vmem:[#allocation5 + $0x4] sm:$0xf]
    %v71 = vld [vmem:[#allocation5 + $0x8] sm:$0xf]
    %v72 = vld [vmem:[#allocation5 + $0xc] sm:$0xf]
    %v73 = vld [vmem:[#allocation5 + $0x10] sm:$0xf]
    %v74 = vld [vmem:[#allocation5 + $0x14] sm:$0xf]
    %v75 = vld [vmem:[#allocation5 + $0x18] sm:$0xf]
    %v76 = vld [vmem:[#allocation5 + $0x1c] sm:$0xf]
    %v77 = vld [vmem:[%s2] sm:$0x1]
    %v79 = vperm.slane %v77, 0
    %v89 = vunpack.c.l.b16 %v69
    %v90 = vunpack.c.l.b16 %v70
    %v91 = vunpack.c.l.b16 %v71
    %v92 = vunpack.c.l.b16 %v72
    %v93 = vunpack.c.l.b16 %v73
    %v94 = vunpack.c.l.b16 %v74
    %v95 = vunpack.c.l.b16 %v75
    %v96 = vunpack.c.l.b16 %v76
    %v97 = vpack.c.b16 %v90, %v89
    %v98 = vpack.c.b16 %v92, %v91
    %v99 = vpack.c.b16 %v94, %v93
    %v100 = vpack.c.b16 %v96, %v95
    %vm105 = vcmask 523264
    %v107 = vsel %vm105, %v68, 0
    %109 = vmatpush.bf16.msra.mxu0 0
    %110 = vmatpush.bf16.msra.mxu0 0
    %111 = vmatpush.bf16.msra.mxu0 0
    %112 = vmatpush.bf16.msra.mxu0 0
    %113 = vmatpush.bf16.msra.mxu0 %v100
    %114 = vmatpush.bf16.msra.mxu0 %v99
    %115 = vmatpush.bf16.msra.mxu0 %v98
    %116 = vmatpush.bf16.msra.mxu0 %v97
    %117 = vmatmul.bf16.gmra.mxu0 %v107
    %v118 = vpop.f32.mrf.mxu0
    %v119 = vadd.f32 %v79, %v118
    %v120 = vpop.f32.mrf.mxu0
    %121 = vdwg.mxu0
    %v122 = vmax.f32 %v119, 0.0
    %v123 = vpack.c.bf16 %v122, %v122
    %v124 = vld [vmem:[#allocation7] sm:$0xf]
    %v125 = vld [vmem:[#allocation7 + $0x4] sm:$0xf]
    %v126 = vld [vmem:[#allocation7 + $0x8] sm:$0xf]
    %v127 = vld [vmem:[#allocation7 + $0xc] sm:$0xf]
    %v128 = vld [vmem:[#allocation7 + $0x10] sm:$0xf]
    %v129 = vld [vmem:[#allocation7 + $0x14] sm:$0xf]
    %v130 = vld [vmem:[#allocation7 + $0x18] sm:$0xf]
    %v131 = vld [vmem:[#allocation7 + $0x1c] sm:$0xf]
    %v132 = vld [vmem:[#allocation7 + $0x20] sm:$0xf]
    %v133 = vld [vmem:[#allocation7 + $0x24] sm:$0xf]
    %v134 = vld [vmem:[#allocation7 + $0x28] sm:$0xf]
    %v135 = vld [vmem:[#allocation7 + $0x2c] sm:$0xf]
    %v136 = vld [vmem:[#allocation7 + $0x30] sm:$0xf]
    %v137 = vld [vmem:[#allocation7 + $0x34] sm:$0xf]
    %v138 = vld [vmem:[#allocation7 + $0x38] sm:$0xf]
    %v139 = vld [vmem:[#allocation7 + $0x3c] sm:$0xf]
    %v140 = vld [vmem:[%s4] sm:$0x1]
    %v142 = vperm.slane %v140, 0
    %v160 = vunpack.c.l.b16 %v124
    %v161 = vunpack.c.l.b16 %v125
    %v162 = vunpack.c.l.b16 %v126
    %v163 = vunpack.c.l.b16 %v127
    %v164 = vunpack.c.l.b16 %v128
    %v165 = vunpack.c.l.b16 %v129
    %v166 = vunpack.c.l.b16 %v130
    %v167 = vunpack.c.l.b16 %v131
    %v168 = vunpack.c.l.b16 %v132
    %v169 = vunpack.c.l.b16 %v133
    %v170 = vunpack.c.l.b16 %v134
    %v171 = vunpack.c.l.b16 %v135
    %v172 = vunpack.c.l.b16 %v136
    %v173 = vunpack.c.l.b16 %v137
    %v174 = vunpack.c.l.b16 %v138
    %v175 = vunpack.c.l.b16 %v139
    %v176 = vpack.c.b16 %v161, %v160
    %v177 = vpack.c.b16 %v163, %v162
    %v178 = vpack.c.b16 %v165, %v164
    %v179 = vpack.c.b16 %v167, %v166
    %v180 = vpack.c.b16 %v169, %v168
    %v181 = vpack.c.b16 %v171, %v170
    %v182 = vpack.c.b16 %v173, %v172
    %v183 = vpack.c.b16 %v175, %v174
    %192 = vmatpush.bf16.msra.mxu0 %v183
    %193 = vmatpush.bf16.msra.mxu0 %v182
    %194 = vmatpush.bf16.msra.mxu0 %v181
    %195 = vmatpush.bf16.msra.mxu0 %v180
    %196 = vmatpush.bf16.msra.mxu0 %v179
    %197 = vmatpush.bf16.msra.mxu0 %v178
    %198 = vmatpush.bf16.msra.mxu0 %v177
    %199 = vmatpush.bf16.msra.mxu0 %v176
    %200 = vmatmul.bf16.gmra.mxu0 %v123
    %v201 = vpop.f32.mrf.mxu0
    %v202 = vadd.f32 %v142, %v201
    %v203 = vpop.f32.mrf.mxu0
    %204 = vdwg.mxu0
    %v205 = vlaneseq
    %v206 = vand.u32 %v205, 127
    %vm207 = vcmp.lt.s32.totalorder %v206, 10
    %v208 = vsel %vm207, %v202, -1e+30
    %209 = vmax.xlane.f32.xlu0 %v208
    %v210 = vpop.xlane.xlu0 %209
    %v211 = vsub.f32 %v208, %v210
    %v212 = vmul.f32 %v211, 1.442695
    %v213 = vpow.pop %v212
    %214 = vadd.xlane.f32.xlu0 %v213
    %v215 = vpop.xlane.xlu0 %214
    %v216 = vlog2.pop %v215
    %v217 = vmul.f32 %v216, 0.6931472
    %v218 = vsub.f32 %v211, %v217
    %v219 = vpack.c.bf16 %v218, %v218
    %220 = vst [vmem:[#allocation8] sm:$0xf] %v219
    // Predicated region
    $region34: #{tpu_custom_call.1} parent=1 // pred_check
      _
    $region35: #{tpu_custom_call.1} parent=1 // pred_check_branch
      %222 = sbr.rel (0) target = $region37
    $region36: #{tpu_custom_call.1} parent=1 // pred_region
      %224 = vsyncadd [#allocation4], 0
      %s226 = sshll.u32 [#allocation8], 4
      %s227 = int_to_ptr.vmem [resolvable:$true] %s226
      %s228 = sshll.u32 %s5, 4
      %s229 = int_to_ptr.hbm [resolvable:$true] %s228
      %231 = dma.vmem_to_hbm [thread:$0]  %s227, 64, %s229, [#allocation4]
    $region37: #{tpu_custom_call.1} parent=1 // pred_fallthru
      _
    // Predicated region
    $region38: #{tpu_custom_call.1} parent=1 // pred_check
      _
    $region39: #{tpu_custom_call.1} parent=1 // pred_check_branch
      %233 = sbr.rel (0) target = $region41
    $region40: #{tpu_custom_call.1} parent=1 // pred_region
      %235 = dma.done [#allocation4], 64
    $region41: #{tpu_custom_call.1} parent=1 // pred_fallthru
      _
    %236 = vsyncpa [#allocation3], 1
    %237 = vsyncpa [#allocation6], 1
    %238 = vsyncpa [#allocation4], 1

</llo_original>
